<compile_context>
chip_gen: v6e
topology: v6e:2x2x1
jax: 0.10.0
libtpu: 0.0.40
codegen_flags: <defaults>
</compile_context>

<pallas_src>
import jax
import jax.numpy as jnp
from jax.experimental import pallas as pl
from jax.experimental.pallas import tpu as pltpu


def _round_up(n, m):
    return ((n + m - 1) // m) * m


def _safety_critic_kernel(xf_ref, xa_ref, mask_ref,
                          w1a_ref, w1b_ref, b1_ref,
                          w2_ref, b2_ref,
                          w3_ref, b3_ref,
                          out_ref):
    # fc1 with the concat fused:  [X_in | action] @ w1  ==  X_in @ w1a + action @ w1b
    xf = xf_ref[...].astype(jnp.bfloat16)
    xa = xa_ref[...].astype(jnp.bfloat16)
    h1 = jnp.dot(xf, w1a_ref[...], preferred_element_type=jnp.float32)
    h1 = h1 + jnp.dot(xa, w1b_ref[...], preferred_element_type=jnp.float32)
    h1 = jnp.maximum(h1 + b1_ref[...], 0.0)            # f32 bias/ReLU epilogue

    # fc2 (bf16 MXU operands, f32 accumulation + epilogue)
    h2 = jnp.dot(h1.astype(jnp.bfloat16), w2_ref[...],
                 preferred_element_type=jnp.float32)
    h2 = jnp.maximum(h2 + b2_ref[...], 0.0)

    # value head: lane reduction on the VPU/XLU instead of a (H,1) MXU matmul,
    # fused with the b3 bias (SMEM scalar) and the RL_indice mask.
    v = jnp.sum(h2 * w3_ref[...], axis=-1, keepdims=True) + b3_ref[0, 0]
    out_ref[...] = v * mask_ref[...]


def prepare_params(params, num_features):
    """One-time weight preparation; cache the result and reuse across forward calls."""
    w1, b1, w2, b2, w3, b3 = params          # w1:(F+A,H) b1:(1,H) w2:(H,H) b2:(1,H) w3:(H,1) b3:(1,1)
    F = num_features
    H = w1.shape[1]
    return (
        jnp.asarray(w1[:F], jnp.bfloat16),            # w1a (F, H)  MXU operand
        jnp.asarray(w1[F:], jnp.bfloat16),            # w1b (A, H)  MXU operand
        jnp.asarray(b1, jnp.float32).reshape(1, H),   # b1
        jnp.asarray(w2, jnp.bfloat16),                # w2  (H, H)  MXU operand
        jnp.asarray(b2, jnp.float32).reshape(1, H),   # b2
        jnp.asarray(w3, jnp.float32).reshape(1, H),   # w3 row (stays f32: VPU, not MXU)
        jnp.asarray(b3, jnp.float32).reshape(1, 1),   # b3 scalar (SMEM)
    )


def safety_critic_forward(X_in, action, mask, prepared, *, tile_m=2048):
    """X_in: (N, F) f32, action: (N, A) f32, mask: (N,) f32 -> (N, 1) f32."""
    N, F = X_in.shape
    A = action.shape[1]
    w1a, w1b, b1f, w2b, b2f, w3r, b3f = prepared
    H = w1a.shape[1]

    # Sublane-quantized tile; capped so the "parallel" axis has >=2 grid steps whenever N
    # allows it (keeps both v7x TensorCores busy).  No row padding: Pallas masks the
    # ragged final block's store and its OOB rows are never used.
    tile_m = _round_up(max(int(tile_m), 8), 8)
    tm = min(tile_m, max(8, _round_up(pl.cdiv(N, 2), 8)))
    grid = (pl.cdiv(N, tm),)

    xf = jnp.asarray(X_in, jnp.float32)
    xa = jnp.asarray(action, jnp.float32)
    mk = jnp.asarray(mask, jnp.float32).reshape(N, 1)

    return pl.pallas_call(
        _safety_critic_kernel,
        out_shape=jax.ShapeDtypeStruct((N, 1), jnp.float32),
        grid=grid,
        in_specs=[
            pl.BlockSpec((tm, F), lambda i: (i, 0)),   # X_in tile   (pipelined)
            pl.BlockSpec((tm, A), lambda i: (i, 0)),   # action tile (pipelined)
            pl.BlockSpec((tm, 1), lambda i: (i, 0)),   # mask tile   (pipelined)
            pl.BlockSpec((F, H), lambda i: (0, 0)),    # w1a  (VMEM resident)
            pl.BlockSpec((A, H), lambda i: (0, 0)),    # w1b  (resident)
            pl.BlockSpec((1, H), lambda i: (0, 0)),    # b1   (resident)
            pl.BlockSpec((H, H), lambda i: (0, 0)),    # w2   (resident)
            pl.BlockSpec((1, H), lambda i: (0, 0)),    # b2   (resident)
            pl.BlockSpec((1, H), lambda i: (0, 0)),    # w3 row (resident)
            pl.BlockSpec(memory_space=pltpu.MemorySpace.SMEM),  # b3 scalar
        ],
        out_specs=pl.BlockSpec((tm, 1), lambda i: (i, 0)),
        compiler_params=pltpu.CompilerParams(
            dimension_semantics=("parallel",),
        ),
    )(xf, xa, mk, w1a, w1b, b1f, w2b, b2f, w3r, b3f)


def init_params(key, input_dim, hidden_dim=128, output_dim=1):
    """Deterministic init matching nn.Linear shapes (weights stored as (in, out))."""
    def linear_init(k, fan_in, fan_out):
        kw, kb = jax.random.split(k)
        bound = 1.0 / jnp.sqrt(jnp.float32(fan_in))
        w = jax.random.uniform(kw, (fan_in, fan_out), jnp.float32, -bound, bound)
        b = jax.random.uniform(kb, (1, fan_out), jnp.float32, -bound, bound)
        return w, b

    k1, k2, k3 = jax.random.split(key, 3)
    w1, b1 = linear_init(k1, input_dim, hidden_dim)
    w2, b2 = linear_init(k2, hidden_dim, hidden_dim)
    w3, b3 = linear_init(k3, hidden_dim, output_dim)
    return (w1, b1, w2, b2, w3, b3)


def reference_forward(X_in, action, mask, params):
    """Pure-JAX f32 reference (matches the PyTorch module)."""
    w1, b1, w2, b2, w3, b3 = params
    x = jnp.concatenate([X_in, action], axis=1)
    h1 = jnp.maximum(x @ w1 + b1, 0.0)
    h2 = jnp.maximum(h1 @ w2 + b2, 0.0)
    v = h2 @ w3 + b3
    return v * mask.reshape(-1, 1)


if __name__ == "__main__":
    # Small, forward-consistent shapes: N agents, F features, A action-prob dims.
    N, F_dim, A_dim = 8, 24, 8
    input_dim = F_dim + A_dim

    key = jax.random.PRNGKey(0)
    k_x, k_a, k_m, k_p = jax.random.split(key, 4)

    X_in = jax.random.normal(k_x, (N, F_dim), jnp.float32)
    action_probs = jax.random.uniform(k_a, (N, A_dim), jnp.float32)
    RL_indice = (jax.random.uniform(k_m, (N,), jnp.float32) > 0.3).astype(jnp.float32)

    params = init_params(k_p, input_dim)
    prepared = prepare_params(params, F_dim)   # hoisted weight prep, reused across calls

    out = jax.block_until_ready(
        safety_critic_forward(X_in, action_probs, RL_indice, prepared))
    ref = reference_forward(X_in, action_probs, RL_indice, params)
    assert out.shape == (N, 1)
    # bf16 matmul operands (f32 accumulation) -> loosened tolerance vs. the f32 reference.
    assert jnp.allclose(out, ref, atol=2e-2, rtol=2e-2)

    # Second check: multi-tile grid with a RAGGED final block (no wrapper padding),
    # weights resident across grid steps.
    N2 = 21
    k_x2, k_a2, k_m2 = jax.random.split(jax.random.PRNGKey(1), 3)
    X2 = jax.random.normal(k_x2, (N2, F_dim), jnp.float32)
    A2 = jax.random.uniform(k_a2, (N2, A_dim), jnp.float32)
    M2 = (jax.random.uniform(k_m2, (N2,), jnp.float32) > 0.3).astype(jnp.float32)
    out2 = jax.block_until_ready(
        safety_critic_forward(X2, A2, M2, prepared, tile_m=8))
    ref2 = reference_forward(X2, A2, M2, params)
    assert out2.shape == (N2, 1)
    assert jnp.allclose(out2, ref2, atol=2e-2, rtol=2e-2)

    print("KERNEL_OK")
</pallas_src>

<mosaic_0001>
module attributes {stable_mosaic.version = 11 : i64} {
  func.func @_safety_critic_kernel(%arg0: i32, %arg1: memref<8x24xf32, #tpu.memory_space<vmem>>, %arg2: memref<8x8xf32, #tpu.memory_space<vmem>>, %arg3: memref<8x1xf32, #tpu.memory_space<vmem>>, %arg4: memref<24x128xbf16, #tpu.memory_space<vmem>>, %arg5: memref<8x128xbf16, #tpu.memory_space<vmem>>, %arg6: memref<1x128xf32, #tpu.memory_space<vmem>>, %arg7: memref<128x128xbf16, #tpu.memory_space<vmem>>, %arg8: memref<1x128xf32, #tpu.memory_space<vmem>>, %arg9: memref<1x128xf32, #tpu.memory_space<vmem>>, %arg10: memref<1x1xf32, #tpu.memory_space<smem>>, %arg11: memref<8x1xf32, #tpu.memory_space<vmem>>) attributes {dimension_semantics = [#tpu.dimension_semantics<parallel>], iteration_bounds = array<i64: 1>, scalar_prefetch = 0 : i64, scratch_operands = 0 : i64, tpu.core_type = #tpu.core_type<tc>, window_params = [{transform_indices = @transform_0, window_bounds = array<i64: 8, 24>}, {transform_indices = @transform_1, window_bounds = array<i64: 8, 8>}, {transform_indices = @transform_2, window_bounds = array<i64: 8, 1>}, {pipeline_mode = #tpu.pipeline_mode<synchronous>, transform_indices = @transform_3, window_bounds = array<i64: 24, 128>}, {pipeline_mode = #tpu.pipeline_mode<synchronous>, transform_indices = @transform_4, window_bounds = array<i64: 8, 128>}, {pipeline_mode = #tpu.pipeline_mode<synchronous>, transform_indices = @transform_5, window_bounds = array<i64: 1, 128>}, {pipeline_mode = #tpu.pipeline_mode<synchronous>, transform_indices = @transform_6, window_bounds = array<i64: 128, 128>}, {pipeline_mode = #tpu.pipeline_mode<synchronous>, transform_indices = @transform_7, window_bounds = array<i64: 1, 128>}, {pipeline_mode = #tpu.pipeline_mode<synchronous>, transform_indices = @transform_8, window_bounds = array<i64: 1, 128>}, {transform_indices = @transform_9, window_bounds = array<i64: 1, 1>}, {transform_indices = @transform_10, window_bounds = array<i64: 8, 1>}]} {
    %c0 = arith.constant 0 : index
    %c0_0 = arith.constant 0 : index
    %0 = vector.load %arg1[%c0, %c0_0] : memref<8x24xf32, #tpu.memory_space<vmem>>, vector<8x24xf32>
    %1 = arith.truncf %0 : vector<8x24xf32> to vector<8x24xbf16>
    %c0_1 = arith.constant 0 : index
    %c0_2 = arith.constant 0 : index
    %2 = vector.load %arg2[%c0_1, %c0_2] : memref<8x8xf32, #tpu.memory_space<vmem>>, vector<8x8xf32>
    %3 = arith.truncf %2 : vector<8x8xf32> to vector<8x8xbf16>
    %c0_3 = arith.constant 0 : index
    %c0_4 = arith.constant 0 : index
    %4 = vector.load %arg4[%c0_3, %c0_4] : memref<24x128xbf16, #tpu.memory_space<vmem>>, vector<24x128xbf16>
    %cst = arith.constant dense<0.000000e+00> : vector<8x128xf32>
    %5 = tpu.matmul %1, %4, %cst {dimension_numbers = #tpu.dot_dimension_numbers<[1], [0], [0], [1], [0, 0, 1, 1], [], []>} : vector<8x24xbf16>, vector<24x128xbf16>, vector<8x128xf32> -> vector<8x128xf32>
    %c0_5 = arith.constant 0 : index
    %c0_6 = arith.constant 0 : index
    %6 = vector.load %arg5[%c0_5, %c0_6] : memref<8x128xbf16, #tpu.memory_space<vmem>>, vector<8x128xbf16>
    %cst_7 = arith.constant dense<0.000000e+00> : vector<8x128xf32>
    %7 = tpu.matmul %3, %6, %cst_7 {dimension_numbers = #tpu.dot_dimension_numbers<[1], [0], [0], [1], [0, 0, 1, 1], [], []>} : vector<8x8xbf16>, vector<8x128xbf16>, vector<8x128xf32> -> vector<8x128xf32>
    %8 = arith.addf %5, %7 : vector<8x128xf32>
    %c0_8 = arith.constant 0 : index
    %c0_9 = arith.constant 0 : index
    %9 = vector.load %arg6[%c0_8, %c0_9] : memref<1x128xf32, #tpu.memory_space<vmem>>, vector<1x128xf32>
    %10 = vector.broadcast %9 : vector<1x128xf32> to vector<8x128xf32>
    %11 = arith.addf %8, %10 : vector<8x128xf32>
    %cst_10 = arith.constant 0.000000e+00 : f32
    %12 = vector.broadcast %cst_10 : f32 to vector<8x128xf32>
    %13 = arith.maximumf %11, %12 : vector<8x128xf32>
    %14 = arith.truncf %13 : vector<8x128xf32> to vector<8x128xbf16>
    %c0_11 = arith.constant 0 : index
    %c0_12 = arith.constant 0 : index
    %15 = vector.load %arg7[%c0_11, %c0_12] : memref<128x128xbf16, #tpu.memory_space<vmem>>, vector<128x128xbf16>
    %cst_13 = arith.constant dense<0.000000e+00> : vector<8x128xf32>
    %16 = tpu.matmul %14, %15, %cst_13 {dimension_numbers = #tpu.dot_dimension_numbers<[1], [0], [0], [1], [0, 0, 1, 1], [], []>} : vector<8x128xbf16>, vector<128x128xbf16>, vector<8x128xf32> -> vector<8x128xf32>
    %c0_14 = arith.constant 0 : index
    %c0_15 = arith.constant 0 : index
    %17 = vector.load %arg8[%c0_14, %c0_15] : memref<1x128xf32, #tpu.memory_space<vmem>>, vector<1x128xf32>
    %18 = vector.broadcast %17 : vector<1x128xf32> to vector<8x128xf32>
    %19 = arith.addf %16, %18 : vector<8x128xf32>
    %cst_16 = arith.constant 0.000000e+00 : f32
    %20 = vector.broadcast %cst_16 : f32 to vector<8x128xf32>
    %21 = arith.maximumf %19, %20 : vector<8x128xf32>
    %c0_17 = arith.constant 0 : index
    %c0_18 = arith.constant 0 : index
    %22 = vector.load %arg9[%c0_17, %c0_18] : memref<1x128xf32, #tpu.memory_space<vmem>>, vector<1x128xf32>
    %23 = vector.broadcast %22 : vector<1x128xf32> to vector<8x128xf32>
    %24 = arith.mulf %21, %23 : vector<8x128xf32>
    %cst_19 = arith.constant dense<0.000000e+00> : vector<8xf32>
    %25 = vector.multi_reduction <add>, %24, %cst_19 [1] : vector<8x128xf32> to vector<8xf32>
    %26 = vector.shape_cast %25 : vector<8xf32> to vector<8x1xf32>
    %c0_20 = arith.constant 0 : index
    %c0_21 = arith.constant 0 : index
    %27 = memref.load %arg10[%c0_20, %c0_21] : memref<1x1xf32, #tpu.memory_space<smem>>
    %28 = vector.broadcast %27 : f32 to vector<8x1xf32>
    %29 = arith.addf %26, %28 : vector<8x1xf32>
    %c0_22 = arith.constant 0 : index
    %c0_23 = arith.constant 0 : index
    %30 = vector.load %arg3[%c0_22, %c0_23] : memref<8x1xf32, #tpu.memory_space<vmem>>, vector<8x1xf32>
    %31 = arith.mulf %29, %30 : vector<8x1xf32>
    %c0_24 = arith.constant 0 : index
    %c0_25 = arith.constant 0 : index
    %32 = vector.load %arg11[%c0_24, %c0_25] : memref<8x1xf32, #tpu.memory_space<vmem>>, vector<8x1xf32>
    tpu.vector_store %arg11[%c0_24, %c0_25], %31 {strides = array<i32>} : memref<8x1xf32, #tpu.memory_space<vmem>>, vector<8x1xf32>,
    return
  }
  func.func @transform_0(%arg0: i32) -> (i32, i32) {
    %c0_i32 = arith.constant 0 : i32
    %c0_i32_0 = arith.constant 0 : i32
    return %arg0, %c0_i32 : i32, i32
  }
  func.func @transform_1(%arg0: i32) -> (i32, i32) {
    %c0_i32 = arith.constant 0 : i32
    %c0_i32_0 = arith.constant 0 : i32
    return %arg0, %c0_i32 : i32, i32
  }
  func.func @transform_2(%arg0: i32) -> (i32, i32) {
    %c0_i32 = arith.constant 0 : i32
    %c0_i32_0 = arith.constant 0 : i32
    return %arg0, %c0_i32 : i32, i32
  }
  func.func @transform_3(%arg0: i32) -> (i32, i32) {
    %c0_i32 = arith.constant 0 : i32
    %c0_i32_0 = arith.constant 0 : i32
    %c0_i32_1 = arith.constant 0 : i32
    return %c0_i32, %c0_i32_0 : i32, i32
  }
  func.func @transform_4(%arg0: i32) -> (i32, i32) {
    %c0_i32 = arith.constant 0 : i32
    %c0_i32_0 = arith.constant 0 : i32
    %c0_i32_1 = arith.constant 0 : i32
    return %c0_i32, %c0_i32_0 : i32, i32
  }
  func.func @transform_5(%arg0: i32) -> (i32, i32) {
    %c0_i32 = arith.constant 0 : i32
    %c0_i32_0 = arith.constant 0 : i32
    %c0_i32_1 = arith.constant 0 : i32
    return %c0_i32, %c0_i32_0 : i32, i32
  }
  func.func @transform_6(%arg0: i32) -> (i32, i32) {
    %c0_i32 = arith.constant 0 : i32
    %c0_i32_0 = arith.constant 0 : i32
    %c0_i32_1 = arith.constant 0 : i32
    return %c0_i32, %c0_i32_0 : i32, i32
  }
  func.func @transform_7(%arg0: i32) -> (i32, i32) {
    %c0_i32 = arith.constant 0 : i32
    %c0_i32_0 = arith.constant 0 : i32
    %c0_i32_1 = arith.constant 0 : i32
    return %c0_i32, %c0_i32_0 : i32, i32
  }
  func.func @transform_8(%arg0: i32) -> (i32, i32) {
    %c0_i32 = arith.constant 0 : i32
    %c0_i32_0 = arith.constant 0 : i32
    %c0_i32_1 = arith.constant 0 : i32
    return %c0_i32, %c0_i32_0 : i32, i32
  }
  func.func @transform_9(%arg0: i32) -> (i32, i32) {
    %c0_i32 = arith.constant 0 : i32
    %c0_i32_0 = arith.constant 0 : i32
    %c0_i32_1 = arith.constant 0 : i32
    return %c0_i32, %c0_i32_0 : i32, i32
  }
  func.func @transform_10(%arg0: i32) -> (i32, i32) {
    %c0_i32 = arith.constant 0 : i32
    %c0_i32_0 = arith.constant 0 : i32
    return %arg0, %c0_i32 : i32, i32
  }
}

</mosaic_0001>

<llo_original>
// kernel: tpu_custom_call.1
$region0: #{tpu_custom_call.1}
  #allocation0 [shape = 'u32[]', space=smem, size = 0x4, offset = 0x4, fixed_abs, tag = 'smem constant byte address 0x4 - core index']
  #allocation1 [shape = 'u32[144,128]{1,0:T(1,128)}', space=vmem, size = 0x12000, scoped, tag = 'internal scratch']
  #allocation2 [shape = 'f32[1,1]{1,0:T(1,128)S(6)}', space=smem, size = 0x200, scoped, tag = 'scoped memory for tpu_custom_call.1']
  %s0 = inlined_call_operand.hbm [shape: f32[8,24], index: 0, kind: input, shape index: {}]
  %s1 = inlined_call_operand.hbm [shape: f32[8,8], index: 1, kind: input, shape index: {}]
  %s2 = inlined_call_operand.vmem [shape: f32[8,1], index: 2, kind: input, shape index: {}]
  %s3 = inlined_call_operand.vmem [shape: bf16[24,128], index: 3, kind: input, shape index: {}]
  %s4 = inlined_call_operand.vmem [shape: bf16[8,128], index: 4, kind: input, shape index: {}]
  %s5 = inlined_call_operand.vmem [shape: f32[1,128], index: 5, kind: input, shape index: {}]
  %s6 = inlined_call_operand.hbm [shape: bf16[128,128], index: 6, kind: input, shape index: {}]
  %s7 = inlined_call_operand.vmem [shape: f32[1,128], index: 7, kind: input, shape index: {}]
  %s8 = inlined_call_operand.vmem [shape: f32[1,128], index: 8, kind: input, shape index: {}]
  %s9 = inlined_call_operand.<no memory space> [shape: f32[1,1], index: 9, kind: input, shape index: {}]
  %s10 = inlined_call_operand.vmem [shape: f32[8,1], index: 10, kind: output, shape index: {}]
  %s11 = sld [smem:[#allocation0]]
  $region62: #{tpu_custom_call.1} parent=0
    _
  %s13 = ssub.s32 1, %s11
  %s14 = scalar_select 0, %s13, %s11
  %15 = sst [smem:[#allocation2]] %s9
  $region1: #{tpu_custom_call.1} parent=0
    #allocation3 [shape = 'u8[4096]{0}', space=vmem, size = 0x1000, scoped, tag = 'input window, operand 0, single buffered']
    #allocation4 [shape = 's32[1]{0}', space=sflag, size = 0x4, scoped, tag = 'scoped memory for tpu_custom_call.1']
    #allocation5 [shape = 'u8[4096]{0}', space=vmem, size = 0x1000, scoped, tag = 'input window, operand 1, single buffered']
    #allocation6 [shape = 's32[1]{0}', space=sflag, size = 0x4, scoped, tag = 'scoped memory for tpu_custom_call.1']
    #allocation7 [shape = 'u8[32768]{0}', space=vmem, size = 0x8000, scoped, tag = 'input window, operand 6, single buffered']
    %16 = vsyncpa [#allocation4], 0
    %17 = vsyncpa [#allocation6], 0
    // Predicated region
    $region2: #{tpu_custom_call.1} parent=1 // pred_check
      _
    $region3: #{tpu_custom_call.1} parent=1 // pred_check_branch
      %19 = sbr.rel (0) target = $region5
    $region4: #{tpu_custom_call.1} parent=1 // pred_region
      %s21 = ssub.s32 128, 128
      %22 = vsyncadd [#allocation4], %s21
      %s24 = sshll.u32 [#allocation3], 4
      %s25 = int_to_ptr.vmem [resolvable:$true] %s24
      %27 = dma.hbm_to_vmem [thread:$0]  %s0, 128, %s25, [#allocation4]
    $region5: #{tpu_custom_call.1} parent=1 // pred_fallthru
      _
    // Predicated region
    $region6: #{tpu_custom_call.1} parent=1 // pred_check
      _
    $region7: #{tpu_custom_call.1} parent=1 // pred_check_branch
      %29 = sbr.rel (0) target = $region9
    $region8: #{tpu_custom_call.1} parent=1 // pred_region
      %s31 = ssub.s32 128, 128
      %32 = vsyncadd [#allocation6], %s31
      %s34 = sshll.u32 [#allocation5], 4
      %s35 = int_to_ptr.vmem [resolvable:$true] %s34
      %37 = dma.hbm_to_vmem [thread:$0]  %s1, 128, %s35, [#allocation6]
    $region9: #{tpu_custom_call.1} parent=1 // pred_fallthru
      _
    // Predicated region
    $region10: #{tpu_custom_call.1} parent=1 // pred_check
      _
    $region11: #{tpu_custom_call.1} parent=1 // pred_check_branch
      %39 = sbr.rel (0) target = $region13
    $region12: #{tpu_custom_call.1} parent=1 // pred_region
      _
    $region13: #{tpu_custom_call.1} parent=1 // pred_fallthru
      _
    // Predicated region
    $region14: #{tpu_custom_call.1} parent=1 // pred_check
      _
    $region15: #{tpu_custom_call.1} parent=1 // pred_check_branch
      %41 = sbr.rel (0) target = $region17
    $region16: #{tpu_custom_call.1} parent=1 // pred_region
      _
    $region17: #{tpu_custom_call.1} parent=1 // pred_fallthru
      _
    // Predicated region
    $region18: #{tpu_custom_call.1} parent=1 // pred_check
      _
    $region19: #{tpu_custom_call.1} parent=1 // pred_check_branch
      %43 = sbr.rel (0) target = $region21
    $region20: #{tpu_custom_call.1} parent=1 // pred_region
      _
    $region21: #{tpu_custom_call.1} parent=1 // pred_fallthru
      _
    // Predicated region
    $region22: #{tpu_custom_call.1} parent=1 // pred_check
      _
    $region23: #{tpu_custom_call.1} parent=1 // pred_check_branch
      %45 = sbr.rel (0) target = $region25
    $region24: #{tpu_custom_call.1} parent=1 // pred_region
      _
    $region25: #{tpu_custom_call.1} parent=1 // pred_fallthru
      _
    // Predicated region
    $region26: #{tpu_custom_call.1} parent=1 // pred_check
      _
    $region27: #{tpu_custom_call.1} parent=1 // pred_check_branch
      %47 = sbr.rel (0) target = $region29
    $region28: #{tpu_custom_call.1} parent=1 // pred_region
      %s49 = ssub.s32 1024, 1024
      %50 = vsyncadd [#allocation6], %s49
      %s51 = sshll.u32 [#allocation7], 4
      %s52 = int_to_ptr.vmem [resolvable:$true] %s51
      %57 = dma.hbm_to_vmem [thread:$0]  %s6, 1024, %s52, [#allocation6], 64, 64, 4
    $region29: #{tpu_custom_call.1} parent=1 // pred_fallthru
      _
    // Predicated region
    $region30: #{tpu_custom_call.1} parent=1 // pred_check
      _
    $region31: #{tpu_custom_call.1} parent=1 // pred_check_branch
      %59 = sbr.rel (0) target = $region33
    $region32: #{tpu_custom_call.1} parent=1 // pred_region
      _
    $region33: #{tpu_custom_call.1} parent=1 // pred_fallthru
      _
    // Predicated region
    $region34: #{tpu_custom_call.1} parent=1 // pred_check
      _
    $region35: #{tpu_custom_call.1} parent=1 // pred_check_branch
      %61 = sbr.rel (0) target = $region37
    $region36: #{tpu_custom_call.1} parent=1 // pred_region
      _
    $region37: #{tpu_custom_call.1} parent=1 // pred_fallthru
      _
    // Predicated region
    $region38: #{tpu_custom_call.1} parent=1 // pred_check
      _
    $region39: #{tpu_custom_call.1} parent=1 // pred_check_branch
      %63 = sbr.rel (0) target = $region41
    $region40: #{tpu_custom_call.1} parent=1 // pred_region
      _
    $region41: #{tpu_custom_call.1} parent=1 // pred_fallthru
      _
    // Predicated region
    $region42: #{tpu_custom_call.1} parent=1 // pred_check
      _
    $region43: #{tpu_custom_call.1} parent=1 // pred_check_branch
      %65 = sbr.rel (0) target = $region45
    $region44: #{tpu_custom_call.1} parent=1 // pred_region
      %66 = dma.done [#allocation4], 128
    $region45: #{tpu_custom_call.1} parent=1 // pred_fallthru
      _
    // Predicated region
    $region46: #{tpu_custom_call.1} parent=1 // pred_check
      _
    $region47: #{tpu_custom_call.1} parent=1 // pred_check_branch
      %68 = sbr.rel (0) target = $region49
    $region48: #{tpu_custom_call.1} parent=1 // pred_region
      %69 = dma.done [#allocation6], 128
    $region49: #{tpu_custom_call.1} parent=1 // pred_fallthru
      _
    // Predicated region
    $region50: #{tpu_custom_call.1} parent=1 // pred_check
      _
    $region51: #{tpu_custom_call.1} parent=1 // pred_check_branch
      %71 = sbr.rel (0) target = $region53
    $region52: #{tpu_custom_call.1} parent=1 // pred_region
      %72 = dma.done [#allocation6], 1024
    $region53: #{tpu_custom_call.1} parent=1 // pred_fallthru
      _
    %v74 = vld [vmem:[#allocation3] sm:$0xff]
    %v75 = vpack.c.bf16 %v74, %v74
    %v76 = vld [vmem:[#allocation5] sm:$0xff]
    %v77 = vpack.c.bf16 %v76, %v76
    %v78 = vld [vmem:[%s3] sm:$0xf]
    %v79 = vld [vmem:[%s3 + $0x4] sm:$0xf]
    %v80 = vld [vmem:[%s3 + $0x8] sm:$0xf]
    %v81 = vld [vmem:[%s4] sm:$0xf]
    %vm82 = vcmask 64512
    %v84 = vsel %vm82, %v77, 0
    %vm86 = vcmask 1043456
    %v88 = vsel %vm86, %v81, 0
    %90 = vmatprep.subr.bf16.mxu0 0
    %91 = vmatpush1.bf16.msra.mxu0 0
    %92 = vmatprep.subr.bf16.mxu0 0
    %93 = vmatpush1.bf16.msra.mxu0 0
    %94 = vmatprep.subr.bf16.mxu0 0
    %95 = vmatpush1.bf16.msra.mxu0 0
    %96 = vmatprep.subr.bf16.mxu0 0
    %97 = vmatpush1.bf16.msra.mxu0 0
    %98 = vmatprep.subr.bf16.mxu0 0
    %99 = vmatpush1.bf16.msra.mxu0 0
    %100 = vmatprep.subr.bf16.mxu0 0
    %101 = vmatpush1.bf16.msra.mxu0 0
    %102 = vmatprep.subr.bf16.mxu0 0
    %103 = vmatpush1.bf16.msra.mxu0 0
    %104 = vmatprep.subr.bf16.mxu0 0
    %105 = vmatpush1.bf16.msra.mxu0 %v88
    %106 = vmatprep.subr.bf16.mxu0 0
    %107 = vmatpush2.bf16.msra.mxu0 0
    %108 = vmatprep.subr.bf16.mxu0 0
    %109 = vmatpush2.bf16.msra.mxu0 0
    %110 = vmatprep.subr.bf16.mxu0 0
    %111 = vmatpush2.bf16.msra.mxu0 0
    %112 = vmatprep.subr.bf16.mxu0 0
    %113 = vmatpush2.bf16.msra.mxu0 0
    %114 = vmatprep.subr.bf16.mxu0 0
    %115 = vmatpush2.bf16.msra.mxu0 0
    %116 = vmatprep.subr.bf16.mxu0 0
    %117 = vmatpush2.bf16.msra.mxu0 0
    %118 = vmatprep.subr.bf16.mxu0 0
    %119 = vmatpush2.bf16.msra.mxu0 0
    %120 = vmatprep.subr.bf16.mxu0 0
    %121 = vmatpush2.bf16.msra.mxu0 0
    %122 = vmatprep.mubr.bf16.mxu0 0
    %123 = vmatmul.mubr.bf16.gmra.mxu0 %v84
    %v124 = vpop.f32.mrf.mxu0
    %v125 = vadd.f32 0.0, %v124
    %v126 = vpop.f32.mrf.mxu0
    %v127 = vpop.f32.mrf.mxu0
    %v128 = vpop.f32.mrf.mxu0
    %129 = vdwg.mxu0
    %v133 = vunpack.c.l.b16 %v78
    %v134 = vunpack.c.l.b16 %v79
    %v135 = vunpack.c.l.b16 %v80
    %v136 = vpack.c.b16 %v134, %v133
    %v137 = vpack.c.b16 %v135, %v135
    %vm139 = vcmask 195584
    %v141 = vsel %vm139, %v75, 0
    %v144 = vsel %vm86, %v137, 0
    %146 = vmatprep.subr.bf16.mxu0 0
    %147 = vmatpush1.bf16.msra.mxu0 0
    %148 = vmatprep.subr.bf16.mxu0 0
    %149 = vmatpush1.bf16.msra.mxu0 0
    %150 = vmatprep.subr.bf16.mxu0 0
    %151 = vmatpush1.bf16.msra.mxu0 0
    %152 = vmatprep.subr.bf16.mxu0 0
    %153 = vmatpush1.bf16.msra.mxu0 0
    %154 = vmatprep.subr.bf16.mxu0 0
    %155 = vmatpush1.bf16.msra.mxu0 0
    %156 = vmatprep.subr.bf16.mxu0 0
    %157 = vmatpush1.bf16.msra.mxu0 0
    %158 = vmatprep.subr.bf16.mxu0 0
    %159 = vmatpush1.bf16.msra.mxu0 %v144
    %160 = vmatprep.subr.bf16.mxu0 0
    %161 = vmatpush1.bf16.msra.mxu0 %v136
    %162 = vmatprep.subr.bf16.mxu0 0
    %163 = vmatpush2.bf16.msra.mxu0 0
    %164 = vmatprep.subr.bf16.mxu0 0
    %165 = vmatpush2.bf16.msra.mxu0 0
    %166 = vmatprep.subr.bf16.mxu0 0
    %167 = vmatpush2.bf16.msra.mxu0 0
    %168 = vmatprep.subr.bf16.mxu0 0
    %169 = vmatpush2.bf16.msra.mxu0 0
    %170 = vmatprep.subr.bf16.mxu0 0
    %171 = vmatpush2.bf16.msra.mxu0 0
    %172 = vmatprep.subr.bf16.mxu0 0
    %173 = vmatpush2.bf16.msra.mxu0 0
    %174 = vmatprep.subr.bf16.mxu0 0
    %175 = vmatpush2.bf16.msra.mxu0 0
    %176 = vmatprep.subr.bf16.mxu0 0
    %177 = vmatpush2.bf16.msra.mxu0 0
    %178 = vmatprep.mubr.bf16.mxu0 0
    %179 = vmatmul.mubr.bf16.gmra.mxu0 %v141
    %v180 = vpop.f32.mrf.mxu0
    %v181 = vadd.f32 %v125, %v180
    %v182 = vpop.f32.mrf.mxu0
    %v183 = vpop.f32.mrf.mxu0
    %v184 = vpop.f32.mrf.mxu0
    %185 = vdwg.mxu0
    %v186 = vld [vmem:[%s5] sm:$0x1]
    %v188 = vlaneseq
    %v189 = vshrl.u32 %v188, 7
    %v190 = vsub.s32 0, %v189
    %v191 = vrot.slane %v186, %v190
    %v193 = vadd.f32 %v181, %v191
    %v194 = vmax.f32 %v193, 0.0
    %v195 = vpack.c.bf16 %v194, %v194
    %v196 = vld [vmem:[#allocation7] sm:$0xf]
    %v197 = vld [vmem:[#allocation7 + $0x4] sm:$0xf]
    %v198 = vld [vmem:[#allocation7 + $0x8] sm:$0xf]
    %v199 = vld [vmem:[#allocation7 + $0xc] sm:$0xf]
    %v200 = vld [vmem:[#allocation7 + $0x10] sm:$0xf]
    %v201 = vld [vmem:[#allocation7 + $0x14] sm:$0xf]
    %v202 = vld [vmem:[#allocation7 + $0x18] sm:$0xf]
    %v203 = vld [vmem:[#allocation7 + $0x1c] sm:$0xf]
    %v204 = vld [vmem:[#allocation7 + $0x20] sm:$0xf]
    %v205 = vld [vmem:[#allocation7 + $0x24] sm:$0xf]
    %v206 = vld [vmem:[#allocation7 + $0x28] sm:$0xf]
    %v207 = vld [vmem:[#allocation7 + $0x2c] sm:$0xf]
    %v208 = vld [vmem:[#allocation7 + $0x30] sm:$0xf]
    %v209 = vld [vmem:[#allocation7 + $0x34] sm:$0xf]
    %v210 = vld [vmem:[#allocation7 + $0x38] sm:$0xf]
    %v211 = vld [vmem:[#allocation7 + $0x3c] sm:$0xf]
    %v212 = vld [vmem:[%s7] sm:$0x1]
    %v214 = vlaneseq
    %v215 = vshrl.u32 %v214, 7
    %v216 = vsub.s32 0, %v215
    %v217 = vrot.slane %v212, %v216
    %v235 = vunpack.c.l.b16 %v196
    %v236 = vunpack.c.l.b16 %v197
    %v237 = vunpack.c.l.b16 %v198
    %v238 = vunpack.c.l.b16 %v199
    %v239 = vunpack.c.l.b16 %v200
    %v240 = vunpack.c.l.b16 %v201
    %v241 = vunpack.c.l.b16 %v202
    %v242 = vunpack.c.l.b16 %v203
    %v243 = vunpack.c.l.b16 %v204
    %v244 = vunpack.c.l.b16 %v205
    %v245 = vunpack.c.l.b16 %v206
    %v246 = vunpack.c.l.b16 %v207
    %v247 = vunpack.c.l.b16 %v208
    %v248 = vunpack.c.l.b16 %v209
    %v249 = vunpack.c.l.b16 %v210
    %v250 = vunpack.c.l.b16 %v211
    %v251 = vpack.c.b16 %v236, %v235
    %v252 = vpack.c.b16 %v238, %v237
    %v253 = vpack.c.b16 %v240, %v239
    %v254 = vpack.c.b16 %v242, %v241
    %v255 = vpack.c.b16 %v244, %v243
    %v256 = vpack.c.b16 %v246, %v245
    %v257 = vpack.c.b16 %v248, %v247
    %v258 = vpack.c.b16 %v250, %v249
    %267 = vmatprep.subr.bf16.mxu0 0
    %268 = vmatpush1.bf16.msra.mxu0 %v258
    %269 = vmatprep.subr.bf16.mxu0 0
    %270 = vmatpush1.bf16.msra.mxu0 %v257
    %271 = vmatprep.subr.bf16.mxu0 0
    %272 = vmatpush1.bf16.msra.mxu0 %v256
    %273 = vmatprep.subr.bf16.mxu0 0
    %274 = vmatpush1.bf16.msra.mxu0 %v255
    %275 = vmatprep.subr.bf16.mxu0 0
    %276 = vmatpush1.bf16.msra.mxu0 %v254
    %277 = vmatprep.subr.bf16.mxu0 0
    %278 = vmatpush1.bf16.msra.mxu0 %v253
    %279 = vmatprep.subr.bf16.mxu0 0
    %280 = vmatpush1.bf16.msra.mxu0 %v252
    %281 = vmatprep.subr.bf16.mxu0 0
    %282 = vmatpush1.bf16.msra.mxu0 %v251
    %283 = vmatprep.subr.bf16.mxu0 0
    %284 = vmatpush2.bf16.msra.mxu0 0
    %285 = vmatprep.subr.bf16.mxu0 0
    %286 = vmatpush2.bf16.msra.mxu0 0
    %287 = vmatprep.subr.bf16.mxu0 0
    %288 = vmatpush2.bf16.msra.mxu0 0
    %289 = vmatprep.subr.bf16.mxu0 0
    %290 = vmatpush2.bf16.msra.mxu0 0
    %291 = vmatprep.subr.bf16.mxu0 0
    %292 = vmatpush2.bf16.msra.mxu0 0
    %293 = vmatprep.subr.bf16.mxu0 0
    %294 = vmatpush2.bf16.msra.mxu0 0
    %295 = vmatprep.subr.bf16.mxu0 0
    %296 = vmatpush2.bf16.msra.mxu0 0
    %297 = vmatprep.subr.bf16.mxu0 0
    %298 = vmatpush2.bf16.msra.mxu0 0
    %299 = vmatprep.mubr.bf16.mxu0 0
    %300 = vmatmul.mubr.bf16.gmra.mxu0 %v195
    %v301 = vpop.f32.mrf.mxu0
    %v302 = vadd.f32 %v217, %v301
    %v303 = vpop.f32.mrf.mxu0
    %v304 = vpop.f32.mrf.mxu0
    %v305 = vpop.f32.mrf.mxu0
    %306 = vdwg.mxu0
    %v307 = vmax.f32 %v302, 0.0
    %v308 = vld [vmem:[%s8] sm:$0x1]
    %v310 = vlaneseq
    %v311 = vshrl.u32 %v310, 7
    %v312 = vsub.s32 0, %v311
    %v313 = vrot.slane %v308, %v312
    %v315 = vmul.f32 %v307, %v313
    %316 = vadd.xlane.f32.xlu0 %v315
    %v317 = vpop.xlane.xlu0 %316
    %s318 = sld [smem:[#allocation2]]
    %v319 = vstv %s318
    %v320 = vadd.f32 %v317, %v319
    %v321 = vld [vmem:[%s2] sm:$0xff]
    %v322 = vmul.f32 %v320, %v321
    %vm323 = vcmask 7168
    %324 = vst.msk [vmem:[%s10] sm:$0xff] %vm323, %v322
    // Predicated region
    $region54: #{tpu_custom_call.1} parent=1 // pred_check
      _
    $region55: #{tpu_custom_call.1} parent=1 // pred_check_branch
      %326 = sbr.rel (0) target = $region57
    $region56: #{tpu_custom_call.1} parent=1 // pred_region
      _
    $region57: #{tpu_custom_call.1} parent=1 // pred_fallthru
      _
    // Predicated region
    $region58: #{tpu_custom_call.1} parent=1 // pred_check
      _
    $region59: #{tpu_custom_call.1} parent=1 // pred_check_branch
      %328 = sbr.rel (0) target = $region61
    $region60: #{tpu_custom_call.1} parent=1 // pred_region
      _
    $region61: #{tpu_custom_call.1} parent=1 // pred_fallthru
      _
    %329 = vsyncpa [#allocation4], 1
    %330 = vsyncpa [#allocation6], 1

</llo_original>
